<compile_context>
chip_gen: v7x
topology: tpu7x:2x2x1
jax: 0.10.0
libtpu: 0.0.40
codegen_flags: <defaults>
</compile_context>

<pallas_src>
import jax
import jax.numpy as jnp
from jax.experimental import pallas as pl
from jax.experimental.pallas import tpu as pltpu


def patch_embed_kernel(x_ref, w_ref, posb_ref, o_ref):
    # x_ref:    (1, TS, K)   patch vectors for one (seq-tile, batch) block
    # w_ref:    (K, E)       reshaped conv weight (resident, constant index)
    # posb_ref: (TS, E)      cropped positional embedding + conv bias
    #                        (resident across the inner batch axis)
    # o_ref:    (1, TS, E)
    acc = jnp.dot(x_ref[0], w_ref[...], preferred_element_type=jnp.float32)
    o_ref[0] = (acc + posb_ref[...].astype(jnp.float32)).astype(o_ref.dtype)


def _vmem_budget_bytes():
    """Per-call VMEM budget: min(64 MiB, physical/2); conservative fallback."""
    physical = 64 * 1024 * 1024  # v7x per-TC minimum if the query fails
    try:
        info = pltpu.get_tpu_info()
        physical = int(getattr(info, "vmem_capacity_bytes", physical))
    except Exception:
        pass
    return min(64 * 1024 * 1024, physical // 2)


def _pick_seq_tile(S, K, E, x_item, posb_item, out_item, w_bytes, budget):
    """Largest divisor of S (multiple of 8, <=1024) whose double-buffered
    working set + resident weight + margin fits the VMEM budget."""
    margin = 2 * 1024 * 1024  # Mosaic internal scratch headroom
    per_row = K * x_item + E * posb_item + E * out_item
    for ts in range(min(S, 1024), 7, -1):
        if S % ts or ts % 8:
            continue
        if w_bytes + 2 * ts * per_row + margin <= budget:
            return ts
    # TODO(synk): pad S when no multiple-of-8 divisor fits instead of falling
    #             back to the full (possibly VMEM-heavy) sequence.
    return S


def patch_embed_forward(latent, conv_w, conv_b, pos_embed, patch_size,
                        compute_dtype=None, out_dtype=None):
    """latent: (B, C, H, W) NCHW; conv_w: (E, C, p, p); conv_b: (E,);
    pos_embed: (1, P, P, E). Returns (B, (H/p)*(W/p), E).

    compute_dtype=jnp.bfloat16 is the recommended production setting for DiT
    inference (x / w / posb / out in bf16, f32 accumulation); the default
    (None) keeps everything f32 for exact parity with the reference."""
    B, C, H, W = latent.shape
    E = conv_w.shape[0]
    p = patch_size
    Hp, Wp = H // p, W // p
    S = Hp * Wp
    K = C * p * p
    if out_dtype is None:
        out_dtype = latent.dtype if compute_dtype is None else compute_dtype

    # --- glue: patchify (matches Conv2d stride==kernel semantics) ---
    # With allow_input_fusion=[0] below, XLA may fuse this reshape/transpose
    # into the pallas_call operand instead of materializing x in HBM.
    x = latent.reshape(B, C, Hp, p, Wp, p)
    x = jnp.transpose(x, (0, 2, 4, 1, 3, 5))          # (B, Hp, Wp, C, p, p)
    x = x.reshape(B, S, K)                            # flatten order (c, ky, kx)

    # --- glue: conv weight as a (K, E) matmul operand ---
    w = conv_w.reshape(E, K).T                        # (K, E)

    if compute_dtype is not None:
        x = x.astype(compute_dtype)
        w = w.astype(compute_dtype)

    # --- glue: crop positional embedding and fold in the conv bias ---
    P = pos_embed.shape[1]
    top = (P - Hp) // 2
    left = (P - Wp) // 2
    pos = pos_embed[0, top:top + Hp, left:left + Wp, :].reshape(S, E)
    posb = pos.astype(jnp.float32) + conv_b.astype(jnp.float32)[None, :]
    posb_dtype = jnp.float32 if compute_dtype is None else compute_dtype
    posb = posb.astype(posb_dtype)                    # (S, E)

    # --- tiling: fit the double-buffered working set into the VMEM budget ---
    x_item = jnp.dtype(x.dtype).itemsize
    w_item = jnp.dtype(w.dtype).itemsize
    posb_item = jnp.dtype(posb.dtype).itemsize
    out_item = jnp.dtype(out_dtype).itemsize
    budget = _vmem_budget_bytes()
    TS = _pick_seq_tile(S, K, E, x_item, posb_item, out_item,
                        w_bytes=K * E * w_item, budget=budget)
    grid = (S // TS, B)                               # batch innermost

    cost = pl.CostEstimate(
        flops=2 * B * S * K * E,
        transcendentals=0,
        bytes_accessed=(B * S * K * x_item            # x
                        + K * E * w_item              # w (resident)
                        + S * E * posb_item           # posb, read once
                        + B * S * E * out_item))      # out

    out = pl.pallas_call(
        patch_embed_kernel,
        out_shape=jax.ShapeDtypeStruct((B, S, E), out_dtype),
        grid_spec=pltpu.PrefetchScalarGridSpec(
            num_scalar_prefetch=0,
            grid=grid,
            in_specs=[
                pl.BlockSpec((1, TS, K), lambda si, bi: (bi, si, 0)),
                pl.BlockSpec((K, E), lambda si, bi: (0, 0)),   # resident weight
                pl.BlockSpec((TS, E), lambda si, bi: (si, 0)),  # resident over bi
            ],
            out_specs=pl.BlockSpec((1, TS, E), lambda si, bi: (bi, si, 0)),
        ),
        compiler_params=pltpu.CompilerParams(
            dimension_semantics=("parallel", "parallel"),
            vmem_limit_bytes=budget,
            allow_input_fusion=[0],
        ),
        cost_estimate=cost,
    )(x, w, posb)
    return out


def reference_forward(latent, conv_w, conv_b, pos_embed, patch_size):
    """Pure-JAX reference replicating the PyTorch module exactly."""
    B, C, H, W = latent.shape
    p = patch_size
    y = jax.lax.conv_general_dilated(
        latent, conv_w, window_strides=(p, p), padding="VALID",
        dimension_numbers=("NCHW", "OIHW", "NCHW"))
    y = y + conv_b[None, :, None, None]
    B, E, Hp, Wp = y.shape
    y = y.reshape(B, E, Hp * Wp).transpose(0, 2, 1)   # (B, S, E)
    P = pos_embed.shape[1]
    top = (P - Hp) // 2
    left = (P - Wp) // 2
    pos = pos_embed[:, top:top + Hp, left:left + Wp, :].reshape(1, Hp * Wp, E)
    return y + pos


if __name__ == "__main__":
    # Small shapes consistent with the module (scaled down from defaults).
    patch_size = 2
    in_channels = 4
    embed_dim = 128
    pos_embed_max_size = 16
    B, H, W = 2, 16, 16

    key = jax.random.PRNGKey(0)
    k1, k2, k3, k4 = jax.random.split(key, 4)

    latent = jax.random.normal(k1, (B, in_channels, H, W), dtype=jnp.float32)
    conv_w = jax.random.normal(
        k2, (embed_dim, in_channels, patch_size, patch_size),
        dtype=jnp.float32) * 0.05
    conv_b = jax.random.normal(k3, (embed_dim,), dtype=jnp.float32) * 0.05
    # Module initializes pos_embed to zeros; use deterministic random values
    # here so the positional-add path is actually exercised.
    pos_embed = jax.random.normal(
        k4, (1, pos_embed_max_size, pos_embed_max_size, embed_dim),
        dtype=jnp.float32) * 0.05

    ref = reference_forward(latent, conv_w, conv_b, pos_embed, patch_size)
    ref = jax.block_until_ready(ref)

    # f32 path: exact parity with the reference.
    out = patch_embed_forward(latent, conv_w, conv_b, pos_embed, patch_size)
    out = jax.block_until_ready(out)
    S = (H // patch_size) * (W // patch_size)
    assert out.shape == (B, S, embed_dim)
    assert jnp.allclose(out, ref, atol=1e-4, rtol=1e-4), "f32 mismatch vs reference"

    # bf16 production path: looser tolerance (bf16 streams, f32 accumulation).
    out_bf16 = patch_embed_forward(latent, conv_w, conv_b, pos_embed, patch_size,
                                   compute_dtype=jnp.bfloat16)
    out_bf16 = jax.block_until_ready(out_bf16)
    assert out_bf16.dtype == jnp.bfloat16
    assert jnp.allclose(out_bf16.astype(jnp.float32), ref, atol=5e-2, rtol=5e-2), \
        "bf16 mismatch vs reference"

    print("KERNEL_OK")
</pallas_src>

<mosaic_0001>
module attributes {stable_mosaic.version = 11 : i64} {
  func.func @patch_embed_kernel(%arg0: i32, %arg1: i32, %arg2: memref<1x64x16xf32, #tpu.memory_space<vmem>>, %arg3: memref<16x128xf32, #tpu.memory_space<vmem>>, %arg4: memref<64x128xf32, #tpu.memory_space<vmem>>, %arg5: memref<1x64x128xf32, #tpu.memory_space<vmem>>) attributes {dimension_semantics = [#tpu.dimension_semantics<parallel>, #tpu.dimension_semantics<parallel>], iteration_bounds = array<i64: 1, 2>, scalar_prefetch = 0 : i64, scratch_operands = 0 : i64, tpu.core_type = #tpu.core_type<tc>, window_params = [{transform_indices = @transform_0, window_bounds = array<i64: 1, 64, 16>}, {pipeline_mode = #tpu.pipeline_mode<synchronous>, transform_indices = @transform_1, window_bounds = array<i64: 16, 128>}, {transform_indices = @transform_2, window_bounds = array<i64: 64, 128>}, {transform_indices = @transform_3, window_bounds = array<i64: 1, 64, 128>}]} {
    %c0 = arith.constant 0 : index
    %c0_0 = arith.constant 0 : index
    %c0_1 = arith.constant 0 : index
    %0 = vector.load %arg2[%c0, %c0_0, %c0_1] : memref<1x64x16xf32, #tpu.memory_space<vmem>>, vector<1x64x16xf32>
    %1 = vector.shape_cast %0 : vector<1x64x16xf32> to vector<64x16xf32>
    %c0_2 = arith.constant 0 : index
    %c0_3 = arith.constant 0 : index
    %2 = vector.load %arg3[%c0_2, %c0_3] : memref<16x128xf32, #tpu.memory_space<vmem>>, vector<16x128xf32>
    %cst = arith.constant dense<0.000000e+00> : vector<64x128xf32>
    %3 = tpu.matmul %1, %2, %cst {dimension_numbers = #tpu.dot_dimension_numbers<[1], [0], [0], [1], [0, 0, 1, 1], [], []>} : vector<64x16xf32>, vector<16x128xf32>, vector<64x128xf32> -> vector<64x128xf32>
    %c0_4 = arith.constant 0 : index
    %c0_5 = arith.constant 0 : index
    %4 = vector.load %arg4[%c0_4, %c0_5] : memref<64x128xf32, #tpu.memory_space<vmem>>, vector<64x128xf32>
    %5 = arith.addf %3, %4 : vector<64x128xf32>
    %c0_6 = arith.constant 0 : index
    %c0_7 = arith.constant 0 : index
    %c0_8 = arith.constant 0 : index
    %6 = vector.load %arg5[%c0_6, %c0_7, %c0_8] : memref<1x64x128xf32, #tpu.memory_space<vmem>>, vector<1x64x128xf32>
    %7 = vector.shape_cast %6 : vector<1x64x128xf32> to vector<64x128xf32>
    %8 = vector.shape_cast %5 : vector<64x128xf32> to vector<1x64x128xf32>
    tpu.vector_store %arg5[%c0_6, %c0_7, %c0_8], %8 {strides = array<i32>} : memref<1x64x128xf32, #tpu.memory_space<vmem>>, vector<1x64x128xf32>,
    return
  }
  func.func @transform_0(%arg0: i32, %arg1: i32) -> (i32, i32, i32) {
    %c0_i32 = arith.constant 0 : i32
    %c0_i32_0 = arith.constant 0 : i32
    return %arg1, %arg0, %c0_i32 : i32, i32, i32
  }
  func.func @transform_1(%arg0: i32, %arg1: i32) -> (i32, i32) {
    %c0_i32 = arith.constant 0 : i32
    %c0_i32_0 = arith.constant 0 : i32
    %c0_i32_1 = arith.constant 0 : i32
    return %c0_i32, %c0_i32_0 : i32, i32
  }
  func.func @transform_2(%arg0: i32, %arg1: i32) -> (i32, i32) {
    %c0_i32 = arith.constant 0 : i32
    %c0_i32_0 = arith.constant 0 : i32
    return %arg0, %c0_i32 : i32, i32
  }
  func.func @transform_3(%arg0: i32, %arg1: i32) -> (i32, i32, i32) {
    %c0_i32 = arith.constant 0 : i32
    %c0_i32_0 = arith.constant 0 : i32
    return %arg1, %arg0, %c0_i32 : i32, i32, i32
  }
}

</mosaic_0001>

<llo_original>
// kernel: tpu_custom_call.1
$region0: #{tpu_custom_call.1}
  #allocation0 [shape = 'u32[]', space=smem, size = 0x4, offset = 0x4, fixed_abs, tag = 'smem constant byte address 0x4 - core index']
  #allocation1 [shape = 'u32[144,128]{1,0:T(1,128)}', space=vmem, size = 0x12000, scoped, tag = 'internal scratch']
  %s0 = inlined_call_operand.vmem [shape: f32[2,64,16], index: 0, kind: input, shape index: {}]
  %s1 = inlined_call_operand.vmem [shape: f32[16,128], index: 1, kind: input, shape index: {}]
  %s2 = inlined_call_operand.vmem [shape: f32[64,128], index: 2, kind: input, shape index: {}]
  %s3 = inlined_call_operand.hbm [shape: f32[2,64,128], index: 3, kind: output, shape index: {}]
  %s4 = sld [smem:[#allocation0]]
  $region45: #{tpu_custom_call.1} parent=0
    _
  %s6 = ssub.s32 1, %s4
  %s7 = scalar_select 0, %s6, %s4
  $region1: #{tpu_custom_call.1} parent=0
    #allocation2 [shape = 'u8[65536]{0}', space=vmem, size = 0x10000, scoped, tag = 'output window, operand 0']
    #allocation3 [shape = 's32[2]{0}', space=sflag, size = 0x8, scoped, tag = 'scoped memory for tpu_custom_call.1']
    %8 = vsyncpa [#allocation3], 0
    %s9 = scalar_lea.sflag [#allocation3], 1
    %10 = vsyncpa %s9, 0
    loop: start=0, step=1, limit=4
    $region2: #{tpu_custom_call.1} parent=1 // loop_pre_header
      _
    $region3: #{tpu_custom_call.1} parent=1 // loop_header
      %s12 = sphi 0, %s16
      %p13 = scmp.ge.s32.totalorder %s12, 4
      %s19 = sphi 0, %s31
      %s20 = sphi 0, %s27
      %s21 = sphi 0, %s19
      %s22 = sphi 0, %s20
      %s23 = sphi 0, %s21
      %s24 = sphi 0, %s22
      %s36 = sphi 0, %s38
      %s39 = sphi 0, %s36
      %s40 = sphi 0, %s39
      %s56 = sphi 0, %s40
      %s60 = sphi 0, %s60
      %s62 = sphi 0, %s60
      %s63 = sphi 0, %s62
      %s77 = sphi 0, %s63
      %s83 = sphi 0, %s85
      %s86 = sphi 0, %s83
      %s87 = sphi 0, %s86
      %s103 = sphi 0, %s87
      %s111 = sphi 0, %s113
      %s114 = sphi 0, %s111
      %s115 = sphi 0, %s114
      %s131 = sphi 0, %s115
    $region4: #{tpu_custom_call.1} parent=1 // loop_header_branch
      %15 = sbr.rel (%p13) target = $region8
    $region5: #{tpu_custom_call.1} parent=1 // loop_body
      %s17 = ssub.s32 %s12, 1
      %s18 = ssub.s32 %s12, 2
      %s25 = sadd.s32 1, %s20
      %p26 = scmp.ge.s32.totalorder %s25, 2
      %s27 = scalar_select %p26, 0, %s25
      %s28 = sadd.s32 1, %s19
      %s29 = scalar_select %p26, %s28, %s19
      %p30 = scmp.ge.s32.totalorder %s29, 1
      %s31 = scalar_select %p30, 0, %s29
      %s32 = ssub.s32 %s20, %s27
      %s33 = ssub.s32 %s19, %s31
      %s34 = sor.u32 %s32, %s33
      %p35 = scmp.eq.s32.totalorder %s34, 0
      %s37 = sadd.s32 %s36, 1
      %s38 = scalar_select %p35, %s36, %s37
      %p41 = pneg %p35
      %p42 = scmp.eq.s32.totalorder %s12, 1
      %p43 = por %p41, %p42
      %p44 = scmp.ne.s32.totalorder %s36, %s39
      %p45 = scmp.eq.s32.totalorder %s12, 0
      %p46 = por %p44, %p45
      %p47 = scmp.ne.s32.totalorder %s36, %s39
      %p48 = scmp.eq.s32.totalorder %s17, 1
      %p49 = por %p47, %p48
      %p50 = scmp.ne.s32.totalorder %s39, %s40
      %p51 = scmp.eq.s32.totalorder %s17, 0
      %p52 = por %p50, %p51
      %p53 = scmp.ne.s32.totalorder %s39, %s40
      %p54 = scmp.eq.s32.totalorder %s18, 1
      %p55 = por %p53, %p54
      %p57 = scmp.ne.s32.totalorder %s40, %s56
      %p58 = scmp.eq.s32.totalorder %s18, 0
      %p59 = por %p57, %p58
      %s61 = sadd.s32 %s60, 1
      %p64 = scmp.eq.s32.totalorder %s12, 1
      %p65 = scmp.ne.s32.totalorder %s60, %s62
      %p66 = scmp.eq.s32.totalorder %s12, 0
      %p67 = por %p65, %p66
      %p68 = scmp.ne.s32.totalorder %s60, %s62
      %p69 = scmp.eq.s32.totalorder %s17, 1
      %p70 = por %p68, %p69
      %p71 = scmp.ne.s32.totalorder %s62, %s63
      %p72 = scmp.eq.s32.totalorder %s17, 0
      %p73 = por %p71, %p72
      %p74 = scmp.ne.s32.totalorder %s62, %s63
      %p75 = scmp.eq.s32.totalorder %s18, 1
      %p76 = por %p74, %p75
      %p78 = scmp.ne.s32.totalorder %s63, %s77
      %p79 = scmp.eq.s32.totalorder %s18, 0
      %p80 = por %p78, %p79
      %s81 = ssub.s32 %s19, %s31
      %p82 = scmp.eq.s32.totalorder %s81, 0
      %s84 = sadd.s32 %s83, 1
      %s85 = scalar_select %p82, %s83, %s84
      %p88 = pneg %p82
      %p89 = scmp.eq.s32.totalorder %s12, 1
      %p90 = por %p88, %p89
      %p91 = scmp.ne.s32.totalorder %s83, %s86
      %p92 = scmp.eq.s32.totalorder %s12, 0
      %p93 = por %p91, %p92
      %p94 = scmp.ne.s32.totalorder %s83, %s86
      %p95 = scmp.eq.s32.totalorder %s17, 1
      %p96 = por %p94, %p95
      %p97 = scmp.ne.s32.totalorder %s86, %s87
      %p98 = scmp.eq.s32.totalorder %s17, 0
      %p99 = por %p97, %p98
      %p100 = scmp.ne.s32.totalorder %s86, %s87
      %p101 = scmp.eq.s32.totalorder %s18, 1
      %p102 = por %p100, %p101
      %p104 = scmp.ne.s32.totalorder %s87, %s103
      %p105 = scmp.eq.s32.totalorder %s18, 0
      %p106 = por %p104, %p105
      %s107 = ssub.s32 %s20, %s27
      %s108 = ssub.s32 %s19, %s31
      %s109 = sor.u32 %s107, %s108
      %p110 = scmp.eq.s32.totalorder %s109, 0
      %s112 = sadd.s32 %s111, 1
      %s113 = scalar_select %p110, %s111, %s112
      %p116 = pneg %p110
      %p117 = scmp.eq.s32.totalorder %s12, 1
      %p118 = por %p116, %p117
      %p119 = scmp.ne.s32.totalorder %s111, %s114
      %p120 = scmp.eq.s32.totalorder %s12, 0
      %p121 = por %p119, %p120
      %p122 = scmp.ne.s32.totalorder %s111, %s114
      %p123 = scmp.eq.s32.totalorder %s17, 1
      %p124 = por %p122, %p123
      %p125 = scmp.ne.s32.totalorder %s114, %s115
      %p126 = scmp.eq.s32.totalorder %s17, 0
      %p127 = por %p125, %p126
      %p128 = scmp.ne.s32.totalorder %s114, %s115
      %p129 = scmp.eq.s32.totalorder %s18, 1
      %p130 = por %p128, %p129
      %p132 = scmp.ne.s32.totalorder %s115, %s131
      %p133 = scmp.eq.s32.totalorder %s18, 0
      %p134 = por %p132, %p133
      %p135 = scmp.le.s32.totalorder 1, %s12
      %p136 = scmp.lt.s32.totalorder %s12, 3
      %p137 = pnand %p135, %p136
      %p138 = pneg %p137
      // Predicated region
      $region9: #{tpu_custom_call.1} parent=5 // pred_check
        _
      $region10: #{tpu_custom_call.1} parent=5 // pred_check_branch
        %140 = sbr.rel (%p137) target = $region12
      $region11: #{tpu_custom_call.1} parent=5 // pred_region
        %s141 = ssub.s32 %s12, 1
        // Predicated region
        $region13: #{tpu_custom_call.1} parent=11 // pred_check
          %p142 = pneg %p73
        $region14: #{tpu_custom_call.1} parent=11 // pred_check_branch
          %144 = sbr.rel (%p142) target = $region16
        $region15: #{tpu_custom_call.1} parent=11 // pred_region
          _
        $region16: #{tpu_custom_call.1} parent=11 // pred_fallthru
          _
        // Predicated region
        $region17: #{tpu_custom_call.1} parent=11 // pred_check
          %p145 = pneg %p99
        $region18: #{tpu_custom_call.1} parent=11 // pred_check_branch
          %147 = sbr.rel (%p145) target = $region20
        $region19: #{tpu_custom_call.1} parent=11 // pred_region
          %s148 = smul.u32 8, %s21
          %p149 = scmp.lt.s32.totalorder %s148, 7
          %s150 = scalar_select %p149, %s148, 7
          %s151 = smul.addr %s150, 8
          %s152 = scalar_lea.vmem %s2, %s151
          %s153 = smul.u32 8, %s21
        $region20: #{tpu_custom_call.1} parent=11 // pred_fallthru
          _
      $region12: #{tpu_custom_call.1} parent=5 // pred_fallthru
        _
      %p154 = scmp.lt.s32.totalorder %s12, 2
      // Predicated region
      $region21: #{tpu_custom_call.1} parent=5 // pred_check
        %p155 = pneg %p154
      $region22: #{tpu_custom_call.1} parent=5 // pred_check_branch
        %157 = sbr.rel (%p155) target = $region24
      $region23: #{tpu_custom_call.1} parent=5 // pred_region
        // Predicated region
        $region25: #{tpu_custom_call.1} parent=23 // pred_check
          %p158 = pneg %p46
        $region26: #{tpu_custom_call.1} parent=23 // pred_check_branch
          %160 = sbr.rel (%p158) target = $region28
        $region27: #{tpu_custom_call.1} parent=23 // pred_region
          %s161 = smul.u32 8, %s19
          %p162 = scmp.lt.s32.totalorder %s20, 1
          %s163 = scalar_select %p162, %s20, 1
          %p164 = scmp.lt.s32.totalorder %s161, 7
          %s165 = scalar_select %p164, %s161, 7
          %s166 = smul.addr %s163, 8
          %s167 = sadd.s32 %s165, %s166
          %s168 = smul.addr %s167, 8
          %s169 = scalar_lea.vmem %s0, %s168
          %s170 = smul.u32 8, %s19
        $region28: #{tpu_custom_call.1} parent=23 // pred_fallthru
          _
      $region24: #{tpu_custom_call.1} parent=5 // pred_fallthru
        _
      %p171 = scmp.le.s32.totalorder 1, %s12
      %p172 = scmp.lt.s32.totalorder %s12, 3
      %p173 = pnand %p171, %p172
      %p174 = pneg %p173
      // Predicated region
      $region29: #{tpu_custom_call.1} parent=5 // pred_check
        _
      $region30: #{tpu_custom_call.1} parent=5 // pred_check_branch
        %176 = sbr.rel (%p173) target = $region32
      $region31: #{tpu_custom_call.1} parent=5 // pred_region
        %s177 = ssub.s32 %s12, 1
        %s178 = smul.u32 8, %s21
        %p179 = scmp.lt.s32.totalorder %s22, 1
        %s180 = scalar_select %p179, %s22, 1
        %p181 = scmp.lt.s32.totalorder %s178, 7
        %s182 = scalar_select %p181, %s178, 7
        %s183 = smul.addr %s180, 8
        %s184 = sadd.s32 %s182, %s183
        %s185 = smul.addr %s184, 8
        %s186 = scalar_lea.vmem %s0, %s185
        %p187 = pneg %p52
        %p188 = pneg %p49
        %p189 = pneg %p73
        %p190 = pneg %p70
        %s191 = smul.u32 8, %s21
        %p192 = scmp.lt.s32.totalorder %s191, 7
        %s193 = scalar_select %p192, %s191, 7
        %s194 = smul.addr %s193, 8
        %s195 = scalar_lea.vmem %s2, %s194
        %p196 = pneg %p99
        %p197 = pneg %p96
        %p198 = pneg %p127
        %p199 = pneg %p124
        %s200 = sand.u32 %s114, 1
        %s201 = scalar_lea.sflag [#allocation3], %s200
        %s202 = sand.u32 %s114, 1
        %s203 = smul.addr %s202, 64
        %s204 = scalar_lea.vmem [#allocation2], %s203
        %s205 = smul.u32 8, %s21
        %p206 = scmp.lt.s32.totalorder %s22, 1
        %s207 = scalar_select %p206, %s22, 1
        %p208 = scmp.lt.s32.totalorder %s205, 7
        %s209 = scalar_select %p208, %s205, 7
        %s210 = smul.addr %s207, 8
        %s211 = sadd.s32 %s209, %s210
        %s212 = smul.addr %s211, 8
        %s213 = scalar_lea.vmem %s0, %s212
        %s214 = smul.u32 8, %s21
        %s215 = smul.u32 8, %s21
        %p216 = scmp.lt.s32.totalorder %s215, 7
        %s217 = scalar_select %p216, %s215, 7
        %s218 = smul.addr %s217, 8
        %s219 = scalar_lea.vmem %s2, %s218
        %s220 = smul.u32 8, %s21
        %s221 = smul.u32 8, %s21
        %v222 = vld [vmem:[%s213] sm:$0xff]
        %v223 = vld [vmem:[%s213 + $0x8] sm:$0xff]
        %v224 = vld [vmem:[%s213 + $0x10] sm:$0xff]
        %v225 = vld [vmem:[%s213 + $0x18] sm:$0xff]
        %v226 = vld [vmem:[%s213 + $0x20] sm:$0xff]
        %v227 = vld [vmem:[%s213 + $0x28] sm:$0xff]
        %v228 = vld [vmem:[%s213 + $0x30] sm:$0xff]
        %v229 = vld [vmem:[%s213 + $0x38] sm:$0xff]
        %v230 = vld [vmem:[%s1] sm:$0xff]
        %v231 = vld [vmem:[%s1 + $0x8] sm:$0xff]
        %v232 = vld [vmem:[%s219] sm:$0xff]
        %v233 = vld [vmem:[%s219 + $0x8] sm:$0xff]
        %v234 = vld [vmem:[%s219 + $0x10] sm:$0xff]
        %v235 = vld [vmem:[%s219 + $0x18] sm:$0xff]
        %v236 = vld [vmem:[%s219 + $0x20] sm:$0xff]
        %v237 = vld [vmem:[%s219 + $0x28] sm:$0xff]
        %v238 = vld [vmem:[%s219 + $0x30] sm:$0xff]
        %v239 = vld [vmem:[%s219 + $0x38] sm:$0xff]
        %vm240 = vcmask 130048
        %v242 = vsel %vm240, %v222, 0
        %v245 = vsel %vm240, %v223, 0
        %v248 = vsel %vm240, %v224, 0
        %v251 = vsel %vm240, %v225, 0
        %v254 = vsel %vm240, %v226, 0
        %v257 = vsel %vm240, %v227, 0
        %v260 = vsel %vm240, %v228, 0
        %v263 = vsel %vm240, %v229, 0
        %265 = vmatprep.subr.mxu0 0.0
        %266 = vmatpush1.msra.mxu0 %v230
        %267 = vmatprep.subr.mxu0 0.0
        %268 = vmatpush1.msra.mxu0 %v231
        %269 = vmatprep.subr.mxu0 0.0
        %270 = vmatpush1.msra.mxu0 0.0
        %271 = vmatprep.subr.mxu0 0.0
        %272 = vmatpush1.msra.mxu0 0.0
        %273 = vmatprep.subr.mxu0 0.0
        %274 = vmatpush1.msra.mxu0 0.0
        %275 = vmatprep.subr.mxu0 0.0
        %276 = vmatpush1.msra.mxu0 0.0
        %277 = vmatprep.subr.mxu0 0.0
        %278 = vmatpush1.msra.mxu0 0.0
        %279 = vmatprep.subr.mxu0 0.0
        %280 = vmatpush1.msra.mxu0 0.0
        %281 = vmatprep.subr.mxu0 0.0
        %282 = vmatpush1.msra.mxu0 0.0
        %283 = vmatprep.subr.mxu0 0.0
        %284 = vmatpush1.msra.mxu0 0.0
        %285 = vmatprep.subr.mxu0 0.0
        %286 = vmatpush1.msra.mxu0 0.0
        %287 = vmatprep.subr.mxu0 0.0
        %288 = vmatpush1.msra.mxu0 0.0
        %289 = vmatprep.subr.mxu0 0.0
        %290 = vmatpush1.msra.mxu0 0.0
        %291 = vmatprep.subr.mxu0 0.0
        %292 = vmatpush1.msra.mxu0 0.0
        %293 = vmatprep.subr.mxu0 0.0
        %294 = vmatpush1.msra.mxu0 0.0
        %295 = vmatprep.subr.mxu0 0.0
        %296 = vmatpush1.msra.mxu0 0.0
        %297 = vmatprep.subr.mxu0 0.0
        %298 = vmatpush1.msra.mxu0 0.0
        %299 = vmatprep.subr.mxu0 0.0
        %300 = vmatpush1.msra.mxu0 0.0
        %301 = vmatprep.subr.mxu0 0.0
        %302 = vmatpush1.msra.mxu0 0.0
        %303 = vmatprep.subr.mxu0 0.0
        %304 = vmatpush1.msra.mxu0 0.0
        %305 = vmatprep.subr.mxu0 0.0
        %306 = vmatpush1.msra.mxu0 0.0
        %307 = vmatprep.subr.mxu0 0.0
        %308 = vmatpush1.msra.mxu0 0.0
        %309 = vmatprep.subr.mxu0 0.0
        %310 = vmatpush1.msra.mxu0 0.0
        %311 = vmatprep.subr.mxu0 0.0
        %312 = vmatpush1.msra.mxu0 0.0
        %313 = vmatprep.subr.mxu0 0.0
        %314 = vmatpush1.msra.mxu0 0.0
        %315 = vmatprep.subr.mxu0 0.0
        %316 = vmatpush1.msra.mxu0 0.0
        %317 = vmatprep.subr.mxu0 0.0
        %318 = vmatpush1.msra.mxu0 0.0
        %319 = vmatprep.subr.mxu0 0.0
        %320 = vmatpush1.msra.mxu0 0.0
        %321 = vmatprep.subr.mxu0 0.0
        %322 = vmatpush1.msra.mxu0 0.0
        %323 = vmatprep.subr.mxu0 0.0
        %324 = vmatpush1.msra.mxu0 0.0
        %325 = vmatprep.subr.mxu0 0.0
        %326 = vmatpush1.msra.mxu0 0.0
        %327 = vmatprep.subr.mxu0 0.0
        %328 = vmatpush1.msra.mxu0 0.0
        %329 = vmatprep.mubr.f32.mxu0 0.0
        %330 = vmatmul.mubr.f32.gmra.mrb[0].mxu0 %v242
        %v331 = vpop.f32.mrb[0].mxu0
        %v332 = vadd.f32 %v232, %v331
        %v333 = vpop.f32.mrb[0].mxu0
        %334 = vmatprep.mubr.f32.mxu0 0.0
        %335 = vmatmul.mubr.f32.gmra.mrb[0].mxu0 %v245
        %v336 = vpop.f32.mrb[0].mxu0
        %v337 = vadd.f32 %v233, %v336
        %v338 = vpop.f32.mrb[0].mxu0
        %339 = vmatprep.mubr.f32.mxu0 0.0
        %340 = vmatmul.mubr.f32.gmra.mrb[0].mxu0 %v248
        %v341 = vpop.f32.mrb[0].mxu0
        %v342 = vadd.f32 %v234, %v341
        %v343 = vpop.f32.mrb[0].mxu0
        %344 = vmatprep.mubr.f32.mxu0 0.0
        %345 = vmatmul.mubr.f32.gmra.mrb[0].mxu0 %v251
        %v346 = vpop.f32.mrb[0].mxu0
        %v347 = vadd.f32 %v235, %v346
        %v348 = vpop.f32.mrb[0].mxu0
        %349 = vmatprep.mubr.f32.mxu0 0.0
        %350 = vmatmul.mubr.f32.gmra.mrb[0].mxu0 %v254
        %v351 = vpop.f32.mrb[0].mxu0
        %v352 = vadd.f32 %v236, %v351
        %v353 = vpop.f32.mrb[0].mxu0
        %354 = vmatprep.mubr.f32.mxu0 0.0
        %355 = vmatmul.mubr.f32.gmra.mrb[0].mxu0 %v257
        %v356 = vpop.f32.mrb[0].mxu0
        %v357 = vadd.f32 %v237, %v356
        %v358 = vpop.f32.mrb[0].mxu0
        %359 = vmatprep.mubr.f32.mxu0 0.0
        %360 = vmatmul.mubr.f32.gmra.mrb[0].mxu0 %v260
        %v361 = vpop.f32.mrb[0].mxu0
        %v362 = vadd.f32 %v238, %v361
        %v363 = vpop.f32.mrb[0].mxu0
        %364 = vmatprep.mubr.f32.mxu0 0.0
        %365 = vmatmul.mubr.f32.gmra.mrb[0].mxu0 %v263
        %v366 = vpop.f32.mrb[0].mxu0
        %v367 = vadd.f32 %v239, %v366
        %v368 = vpop.f32.mrb[0].mxu0
        %369 = vdwg.mxu0
        %370 = vst [vmem:[%s204] sm:$0xff] %v332
        %371 = vst [vmem:[%s204 + $0x8] sm:$0xff] %v337
        %372 = vst [vmem:[%s204 + $0x10] sm:$0xff] %v342
        %373 = vst [vmem:[%s204 + $0x18] sm:$0xff] %v347
        %374 = vst [vmem:[%s204 + $0x20] sm:$0xff] %v352
        %375 = vst [vmem:[%s204 + $0x28] sm:$0xff] %v357
        %376 = vst [vmem:[%s204 + $0x30] sm:$0xff] %v362
        %377 = vst [vmem:[%s204 + $0x38] sm:$0xff] %v367
        %s378 = sand.u32 %s114, 1
        %s379 = scalar_lea.sflag [#allocation3], %s378
        %s380 = sand.u32 %s114, 1
        %s381 = smul.addr %s380, 64
        %s382 = scalar_lea.vmem [#allocation2], %s381
        // Predicated region
        $region33: #{tpu_custom_call.1} parent=31 // pred_check
          %p383 = pneg %p124
        $region34: #{tpu_custom_call.1} parent=31 // pred_check_branch
          %385 = sbr.rel (%p383) target = $region36
        $region35: #{tpu_custom_call.1} parent=31 // pred_region
          %s386 = smul.u32 8, %s21
          %s388 = ssub.s32 1024, 1024
          %389 = vsyncadd %s379, %s388
          %s390 = smul.addr %s22, 8
          %s391 = sadd.s32 %s386, %s390
          %s392 = smul.addr %s391, 128
          %s393 = scalar_lea.hbm %s3, %s392
          %s394 = sshll.u32 %s382, 4
          %s395 = int_to_ptr.vmem [resolvable:$true] %s394
          %400 = dma.vmem_to_hbm [thread:$0]  %s395, 1024, %s393, %s379, 128, 128, 8
        $region36: #{tpu_custom_call.1} parent=31 // pred_fallthru
          _
      $region32: #{tpu_custom_call.1} parent=5 // pred_fallthru
        _
      %p401 = scmp.le.s32.totalorder 2, %s12
      // Predicated region
      $region37: #{tpu_custom_call.1} parent=5 // pred_check
        %p402 = pneg %p401
      $region38: #{tpu_custom_call.1} parent=5 // pred_check_branch
        %404 = sbr.rel (%p402) target = $region40
      $region39: #{tpu_custom_call.1} parent=5 // pred_region
        %s405 = ssub.s32 %s12, 2
        // Predicated region
        $region41: #{tpu_custom_call.1} parent=39 // pred_check
          %p406 = pneg %p130
        $region42: #{tpu_custom_call.1} parent=39 // pred_check_branch
          %408 = sbr.rel (%p406) target = $region44
        $region43: #{tpu_custom_call.1} parent=39 // pred_region
          %s409 = sand.u32 %s115, 1
          %s410 = scalar_lea.sflag [#allocation3], %s409
          %s411 = sand.u32 %s115, 1
          %s412 = smul.addr %s411, 64
          %s413 = scalar_lea.vmem [#allocation2], %s412
          %414 = dma.done %s410, 1024
        $region44: #{tpu_custom_call.1} parent=39 // pred_fallthru
          _
      $region40: #{tpu_custom_call.1} parent=5 // pred_fallthru
        _
    $region6: #{tpu_custom_call.1} parent=1 // loop_footer
      %s16 = sadd.s32 1, %s12
    $region7: #{tpu_custom_call.1} parent=1 // loop_footer_branch
      %11 = sbr.rel target = $region3
    $region8: #{tpu_custom_call.1} parent=1 // loop_exit
      _
    %415 = vsyncpa [#allocation3], 1
    %s416 = scalar_lea.sflag [#allocation3], 1
    %417 = vsyncpa %s416, 1

</llo_original>
